<compile_context>
chip_gen: v5e
topology: v5e:2x2
jax: 0.10.0
libtpu: 0.0.40
codegen_flags: <defaults>
</compile_context>

<pallas_src>
import functools

import jax
import jax.numpy as jnp
from jax.experimental import pallas as pl
from jax.experimental.pallas import tpu as pltpu


# ----------------------------- Kernel 1: QKV projection ----------------------------- #
def qkv_proj_kernel(x_ref, w_ref, q_ref, k_ref, v_ref, *, compute_dtype):
    # x_ref: (1, bq, D); w_ref: (3, 1, D, dh); q/k/v_ref: (1, 1, bq, dh)
    x = x_ref[0].astype(compute_dtype)                                     # (bq, D)
    q_ref[0, 0] = jnp.dot(x, w_ref[0, 0].astype(compute_dtype),
                          preferred_element_type=jnp.float32).astype(q_ref.dtype)
    k_ref[0, 0] = jnp.dot(x, w_ref[1, 0].astype(compute_dtype),
                          preferred_element_type=jnp.float32).astype(k_ref.dtype)
    v_ref[0, 0] = jnp.dot(x, w_ref[2, 0].astype(compute_dtype),
                          preferred_element_type=jnp.float32).astype(v_ref.dtype)


# ------------------ Kernel 2: flash attention + fused output projection ------------- #
def flash_attn_kernel(q_ref, k_ref, v_ref, wout_ref, bias_ref, o_ref,
                      m_sc, l_sc, acc_sc, out_sc, *,
                      block_q, block_k, causal, compute_dtype, scale):
    # q_ref: (1,1,bq,dh)  k_ref/v_ref: (1,1,bk,dh)  wout_ref: (1,dh,D)
    # bias_ref: (1,D)     o_ref: (1,bq,D)
    qi = pl.program_id(1)
    h = pl.program_id(2)
    ki = pl.program_id(3)
    nh = pl.num_programs(2)
    nk = pl.num_programs(3)

    # ---- per-(b, q-tile, head) init of online-softmax state ----
    @pl.when(ki == 0)
    def _():
        m_sc[...] = jnp.full_like(m_sc, -jnp.inf)
        l_sc[...] = jnp.zeros_like(l_sc)
        acc_sc[...] = jnp.zeros_like(acc_sc)

    # ---- per-(b, q-tile) init of projected output accumulator (bias folded in) ----
    @pl.when(jnp.logical_and(h == 0, ki == 0))
    def _():
        out_sc[...] = jnp.broadcast_to(bias_ref[...], out_sc.shape).astype(jnp.float32)

    q_start = qi * block_q
    k_start = ki * block_k

    def process_kv_tile():
        q = q_ref[0, 0]                                   # (bq, dh), compute_dtype
        k = k_ref[0, 0]                                   # (bk, dh)
        v = v_ref[0, 0]                                   # (bk, dh)
        # Contract over the last dim of both operands -- no explicit k.T / relayout.
        s = jax.lax.dot_general(
            q, k, dimension_numbers=(((1,), (1,)), ((), ())),
            preferred_element_type=jnp.float32) * scale   # (bq, bk) f32
        if causal:
            row = q_start + jax.lax.broadcasted_iota(jnp.int32, (block_q, block_k), 0)
            col = k_start + jax.lax.broadcasted_iota(jnp.int32, (block_q, block_k), 1)
            s = jnp.where(col > row, jnp.float32(-1e30), s)
        # online softmax update
        m_prev = m_sc[...]
        m_new = jnp.maximum(m_prev, jnp.max(s, axis=-1, keepdims=True))
        alpha = jnp.exp(m_prev - m_new)
        p = jnp.exp(s - m_new)
        l_sc[...] = alpha * l_sc[...] + jnp.sum(p, axis=-1, keepdims=True)
        # TODO(synk): dropout on the attention probabilities is identity (p=0.0);
        # stateful-PRNG dropout omitted.
        acc_sc[...] = alpha * acc_sc[...] + jnp.dot(
            p.astype(compute_dtype), v, preferred_element_type=jnp.float32)
        m_sc[...] = m_new

    if causal:
        # Skip kv tiles that lie entirely above the causal diagonal.
        pl.when(k_start < q_start + block_q)(process_kv_tile)
    else:
        process_kv_tile()

    # ---- per-head finalize: normalize once per q-tile, fold in the output projection ----
    approx_recip = jnp.dtype(compute_dtype) != jnp.dtype(jnp.float32)

    @pl.when(ki == nk - 1)
    def _():
        inv_l = pl.reciprocal(l_sc[...], approx=approx_recip)
        o_head = (acc_sc[...] * inv_l).astype(compute_dtype)          # (bq, dh)
        out_sc[...] += jnp.dot(o_head, wout_ref[0].astype(compute_dtype),
                               preferred_element_type=jnp.float32)

    @pl.when(jnp.logical_and(h == nh - 1, ki == nk - 1))
    def _():
        o_ref[0] = out_sc[...].astype(o_ref.dtype)


# ----------------------------------- wrapper ---------------------------------------- #
def attention_forward(x, w_qkv, w_out, b_out, *, heads, dim_head, causal=True,
                      compute_dtype=jnp.float32, block_q=None, block_k=None):
    B, N, D = x.shape
    inner = heads * dim_head
    assert w_qkv.shape == (D, 3 * inner)
    assert w_out.shape == (inner, D)
    assert b_out.shape == (1, D)

    def pick_tile(n, target=128):
        # Use the target tile if it divides the sequence, else fall back to a
        # single full-length tile (valid for small N; full-dim blocks bypass the
        # (8,128) divisibility rule).
        return target if (n >= target and n % target == 0) else n

    bq = block_q if block_q is not None else pick_tile(N)
    bk = block_k if block_k is not None else pick_tile(N)
    assert N % bq == 0 and N % bk == 0
    nq = N // bq
    nk = N // bk

    # One-time parameter relayout so every head sees lane-dense, contiguous weights.
    w_qkv_h = w_qkv.reshape(D, 3, heads, dim_head).transpose(1, 2, 0, 3)   # (3, H, D, dh)
    w_out_h = w_out.reshape(heads, dim_head, D)                            # (H, dh, D)

    # ---- Kernel 1: QKV projection into (B, H, N, dh) ----
    qkv_kernel = functools.partial(qkv_proj_kernel, compute_dtype=compute_dtype)
    qkv_shape = jax.ShapeDtypeStruct((B, heads, N, dim_head), compute_dtype)
    q, k, v = pl.pallas_call(
        qkv_kernel,
        out_shape=(qkv_shape, qkv_shape, qkv_shape),
        grid_spec=pltpu.PrefetchScalarGridSpec(
            num_scalar_prefetch=0,
            grid=(B, heads, nq),
            in_specs=[
                pl.BlockSpec((1, bq, D), lambda b, h, i: (b, i, 0)),
                pl.BlockSpec((3, 1, D, dim_head), lambda b, h, i: (0, h, 0, 0)),
            ],
            out_specs=(
                pl.BlockSpec((1, 1, bq, dim_head), lambda b, h, i: (b, h, i, 0)),
                pl.BlockSpec((1, 1, bq, dim_head), lambda b, h, i: (b, h, i, 0)),
                pl.BlockSpec((1, 1, bq, dim_head), lambda b, h, i: (b, h, i, 0)),
            ),
        ),
        compiler_params=pltpu.CompilerParams(
            dimension_semantics=("parallel", "parallel", "parallel"),
            vmem_limit_bytes=32 * 1024 * 1024),
    )(x, w_qkv_h)

    # ---- Kernel 2: flash attention + fused output projection ----
    attn_kernel = functools.partial(
        flash_attn_kernel, block_q=bq, block_k=bk, causal=causal,
        compute_dtype=compute_dtype, scale=dim_head ** (-0.5))
    out = pl.pallas_call(
        attn_kernel,
        out_shape=jax.ShapeDtypeStruct((B, N, D), x.dtype),
        grid_spec=pltpu.PrefetchScalarGridSpec(
            num_scalar_prefetch=0,
            grid=(B, nq, heads, nk),
            in_specs=[
                pl.BlockSpec((1, 1, bq, dim_head), lambda b, i, h, j: (b, h, i, 0)),  # q
                pl.BlockSpec((1, 1, bk, dim_head), lambda b, i, h, j: (b, h, j, 0)),  # k
                pl.BlockSpec((1, 1, bk, dim_head), lambda b, i, h, j: (b, h, j, 0)),  # v
                pl.BlockSpec((1, dim_head, D), lambda b, i, h, j: (h, 0, 0)),         # w_out[h]
                pl.BlockSpec((1, D), lambda b, i, h, j: (0, 0)),                      # bias
            ],
            out_specs=pl.BlockSpec((1, bq, D), lambda b, i, h, j: (b, i, 0)),
            scratch_shapes=[
                pltpu.VMEM((bq, 1), jnp.float32),         # running max m
                pltpu.VMEM((bq, 1), jnp.float32),         # running denom l
                pltpu.VMEM((bq, dim_head), jnp.float32),  # per-head attention acc
                pltpu.VMEM((bq, D), jnp.float32),         # projected output acc (+bias)
            ],
        ),
        compiler_params=pltpu.CompilerParams(
            dimension_semantics=("parallel", "parallel", "arbitrary", "arbitrary"),
            vmem_limit_bytes=32 * 1024 * 1024),
    )(q, k, v, w_out_h, b_out)
    return out


# ----------------------------------- reference -------------------------------------- #
def attention_reference(x, w_qkv, w_out, b_out, *, heads, dim_head, causal=True):
    B, N, D = x.shape
    inner = heads * dim_head
    scale = dim_head ** (-0.5)
    qkv = jnp.einsum('bnd,de->bne', x, w_qkv)
    q, k, v = jnp.split(qkv, 3, axis=-1)

    def split_heads(t):
        return t.reshape(B, N, heads, dim_head).transpose(0, 2, 1, 3)

    q, k, v = map(split_heads, (q, k, v))
    sim = jnp.einsum('bhid,bhjd->bhij', q, k) * scale
    if causal:
        mask = jnp.triu(jnp.ones((N, N), dtype=bool), k=1)
        sim = jnp.where(mask, -jnp.finfo(jnp.float32).max, sim)
    attn = jax.nn.softmax(sim, axis=-1)
    out = jnp.einsum('bhij,bhjd->bhid', attn, v)
    out = out.transpose(0, 2, 1, 3).reshape(B, N, inner)
    return jnp.einsum('bne,ed->bnd', out, w_out) + b_out[0]


if __name__ == "__main__":
    heads, dim_head = 4, 16
    inner = heads * dim_head

    key = jax.random.PRNGKey(0)
    kx, kqkv, kwo, kbo, kx2 = jax.random.split(key, 5)

    # --- test 1: small shape, f32 compute, tight tolerance ---
    B, N, D = 2, 8, 32
    x = jax.random.normal(kx, (B, N, D), dtype=jnp.float32)
    w_qkv = jax.random.normal(kqkv, (D, 3 * inner), dtype=jnp.float32) * (D ** -0.5)
    w_out = jax.random.normal(kwo, (inner, D), dtype=jnp.float32) * (inner ** -0.5)
    b_out = jax.random.normal(kbo, (1, D), dtype=jnp.float32) * 0.01

    out = attention_forward(x, w_qkv, w_out, b_out,
                            heads=heads, dim_head=dim_head, causal=True)
    out = jax.block_until_ready(out)
    ref = attention_reference(x, w_qkv, w_out, b_out,
                              heads=heads, dim_head=dim_head, causal=True)
    assert jnp.allclose(out, ref, atol=1e-4, rtol=1e-4), "f32 mismatch vs reference"

    # --- test 2: multi-tile causal path (exercises online softmax, tile skipping,
    #             multi-head output accumulation) ---
    N2 = 32
    x2 = jax.random.normal(kx2, (B, N2, D), dtype=jnp.float32)
    out2 = attention_forward(x2, w_qkv, w_out, b_out,
                             heads=heads, dim_head=dim_head, causal=True,
                             block_q=8, block_k=8)
    out2 = jax.block_until_ready(out2)
    ref2 = attention_reference(x2, w_qkv, w_out, b_out,
                               heads=heads, dim_head=dim_head, causal=True)
    assert jnp.allclose(out2, ref2, atol=1e-4, rtol=1e-4), "tiled f32 mismatch vs reference"

    # --- test 3: bf16 MXU inputs / f32 accumulation (v6e / v7x fast path) ---
    out_bf16 = attention_forward(x2, w_qkv, w_out, b_out,
                                 heads=heads, dim_head=dim_head, causal=True,
                                 block_q=8, block_k=8, compute_dtype=jnp.bfloat16)
    out_bf16 = jax.block_until_ready(out_bf16)
    assert jnp.allclose(out_bf16, ref2, atol=6e-2, rtol=6e-2), "bf16 mismatch vs reference"

    print("KERNEL_OK")
</pallas_src>

<mosaic_0001>
module attributes {stable_mosaic.version = 11 : i64} {
  func.func @qkv_proj_kernel(%arg0: i32, %arg1: i32, %arg2: i32, %arg3: memref<1x8x32xf32, #tpu.memory_space<vmem>>, %arg4: memref<3x1x32x16xf32, #tpu.memory_space<vmem>>, %arg5: memref<1x1x8x16xf32, #tpu.memory_space<vmem>>, %arg6: memref<1x1x8x16xf32, #tpu.memory_space<vmem>>, %arg7: memref<1x1x8x16xf32, #tpu.memory_space<vmem>>) attributes {dimension_semantics = [#tpu.dimension_semantics<parallel>, #tpu.dimension_semantics<parallel>, #tpu.dimension_semantics<parallel>], iteration_bounds = array<i64: 2, 4, 1>, scalar_prefetch = 0 : i64, scratch_operands = 0 : i64, tpu.core_type = #tpu.core_type<tc>, window_params = [{transform_indices = @transform_0, window_bounds = array<i64: 1, 8, 32>}, {transform_indices = @transform_1, window_bounds = array<i64: 3, 1, 32, 16>}, {transform_indices = @transform_2, window_bounds = array<i64: 1, 1, 8, 16>}, {transform_indices = @transform_3, window_bounds = array<i64: 1, 1, 8, 16>}, {transform_indices = @transform_4, window_bounds = array<i64: 1, 1, 8, 16>}]} {
    %c0 = arith.constant 0 : index
    %c0_0 = arith.constant 0 : index
    %c0_1 = arith.constant 0 : index
    %0 = vector.load %arg3[%c0, %c0_0, %c0_1] : memref<1x8x32xf32, #tpu.memory_space<vmem>>, vector<1x8x32xf32>
    %1 = vector.shape_cast %0 : vector<1x8x32xf32> to vector<8x32xf32>
    %c0_2 = arith.constant 0 : index
    %c0_3 = arith.constant 0 : index
    %c0_4 = arith.constant 0 : index
    %c0_5 = arith.constant 0 : index
    %2 = vector.load %arg4[%c0_2, %c0_3, %c0_4, %c0_5] : memref<3x1x32x16xf32, #tpu.memory_space<vmem>>, vector<1x1x32x16xf32>
    %3 = vector.shape_cast %2 : vector<1x1x32x16xf32> to vector<32x16xf32>
    %cst = arith.constant dense<0.000000e+00> : vector<8x16xf32>
    %4 = tpu.matmul %1, %3, %cst {dimension_numbers = #tpu.dot_dimension_numbers<[1], [0], [0], [1], [0, 0, 1, 1], [], []>} : vector<8x32xf32>, vector<32x16xf32>, vector<8x16xf32> -> vector<8x16xf32>
    %c0_6 = arith.constant 0 : index
    %c0_7 = arith.constant 0 : index
    %c0_8 = arith.constant 0 : index
    %c0_9 = arith.constant 0 : index
    %5 = vector.load %arg5[%c0_6, %c0_7, %c0_8, %c0_9] : memref<1x1x8x16xf32, #tpu.memory_space<vmem>>, vector<1x1x8x16xf32>
    %6 = vector.shape_cast %5 : vector<1x1x8x16xf32> to vector<8x16xf32>
    %7 = vector.shape_cast %4 : vector<8x16xf32> to vector<1x1x8x16xf32>
    tpu.vector_store %arg5[%c0_6, %c0_7, %c0_8, %c0_9], %7 {strides = array<i32>} : memref<1x1x8x16xf32, #tpu.memory_space<vmem>>, vector<1x1x8x16xf32>,
    %c1 = arith.constant 1 : index
    %c0_10 = arith.constant 0 : index
    %c0_11 = arith.constant 0 : index
    %c0_12 = arith.constant 0 : index
    %8 = vector.load %arg4[%c1, %c0_10, %c0_11, %c0_12] : memref<3x1x32x16xf32, #tpu.memory_space<vmem>>, vector<1x1x32x16xf32>
    %9 = vector.shape_cast %8 : vector<1x1x32x16xf32> to vector<32x16xf32>
    %cst_13 = arith.constant dense<0.000000e+00> : vector<8x16xf32>
    %10 = tpu.matmul %1, %9, %cst_13 {dimension_numbers = #tpu.dot_dimension_numbers<[1], [0], [0], [1], [0, 0, 1, 1], [], []>} : vector<8x32xf32>, vector<32x16xf32>, vector<8x16xf32> -> vector<8x16xf32>
    %c0_14 = arith.constant 0 : index
    %c0_15 = arith.constant 0 : index
    %c0_16 = arith.constant 0 : index
    %c0_17 = arith.constant 0 : index
    %11 = vector.load %arg6[%c0_14, %c0_15, %c0_16, %c0_17] : memref<1x1x8x16xf32, #tpu.memory_space<vmem>>, vector<1x1x8x16xf32>
    %12 = vector.shape_cast %11 : vector<1x1x8x16xf32> to vector<8x16xf32>
    %13 = vector.shape_cast %10 : vector<8x16xf32> to vector<1x1x8x16xf32>
    tpu.vector_store %arg6[%c0_14, %c0_15, %c0_16, %c0_17], %13 {strides = array<i32>} : memref<1x1x8x16xf32, #tpu.memory_space<vmem>>, vector<1x1x8x16xf32>,
    %c2 = arith.constant 2 : index
    %c0_18 = arith.constant 0 : index
    %c0_19 = arith.constant 0 : index
    %c0_20 = arith.constant 0 : index
    %14 = vector.load %arg4[%c2, %c0_18, %c0_19, %c0_20] : memref<3x1x32x16xf32, #tpu.memory_space<vmem>>, vector<1x1x32x16xf32>
    %15 = vector.shape_cast %14 : vector<1x1x32x16xf32> to vector<32x16xf32>
    %cst_21 = arith.constant dense<0.000000e+00> : vector<8x16xf32>
    %16 = tpu.matmul %1, %15, %cst_21 {dimension_numbers = #tpu.dot_dimension_numbers<[1], [0], [0], [1], [0, 0, 1, 1], [], []>} : vector<8x32xf32>, vector<32x16xf32>, vector<8x16xf32> -> vector<8x16xf32>
    %c0_22 = arith.constant 0 : index
    %c0_23 = arith.constant 0 : index
    %c0_24 = arith.constant 0 : index
    %c0_25 = arith.constant 0 : index
    %17 = vector.load %arg7[%c0_22, %c0_23, %c0_24, %c0_25] : memref<1x1x8x16xf32, #tpu.memory_space<vmem>>, vector<1x1x8x16xf32>
    %18 = vector.shape_cast %17 : vector<1x1x8x16xf32> to vector<8x16xf32>
    %19 = vector.shape_cast %16 : vector<8x16xf32> to vector<1x1x8x16xf32>
    tpu.vector_store %arg7[%c0_22, %c0_23, %c0_24, %c0_25], %19 {strides = array<i32>} : memref<1x1x8x16xf32, #tpu.memory_space<vmem>>, vector<1x1x8x16xf32>,
    return
  }
  func.func @transform_0(%arg0: i32, %arg1: i32, %arg2: i32) -> (i32, i32, i32) {
    %c0_i32 = arith.constant 0 : i32
    %c0_i32_0 = arith.constant 0 : i32
    return %arg0, %arg2, %c0_i32 : i32, i32, i32
  }
  func.func @transform_1(%arg0: i32, %arg1: i32, %arg2: i32) -> (i32, i32, i32, i32) {
    %c0_i32 = arith.constant 0 : i32
    %c0_i32_0 = arith.constant 0 : i32
    %c0_i32_1 = arith.constant 0 : i32
    %c0_i32_2 = arith.constant 0 : i32
    return %c0_i32, %arg1, %c0_i32_0, %c0_i32_1 : i32, i32, i32, i32
  }
  func.func @transform_2(%arg0: i32, %arg1: i32, %arg2: i32) -> (i32, i32, i32, i32) {
    %c0_i32 = arith.constant 0 : i32
    %c0_i32_0 = arith.constant 0 : i32
    return %arg0, %arg1, %arg2, %c0_i32 : i32, i32, i32, i32
  }
  func.func @transform_3(%arg0: i32, %arg1: i32, %arg2: i32) -> (i32, i32, i32, i32) {
    %c0_i32 = arith.constant 0 : i32
    %c0_i32_0 = arith.constant 0 : i32
    return %arg0, %arg1, %arg2, %c0_i32 : i32, i32, i32, i32
  }
  func.func @transform_4(%arg0: i32, %arg1: i32, %arg2: i32) -> (i32, i32, i32, i32) {
    %c0_i32 = arith.constant 0 : i32
    %c0_i32_0 = arith.constant 0 : i32
    return %arg0, %arg1, %arg2, %c0_i32 : i32, i32, i32, i32
  }
}

</mosaic_0001>

<llo_original>
// kernel: tpu_custom_call.1
$region0: #{tpu_custom_call.1}
  #allocation0 [shape = 'u32[]', space=smem, size = 0x4, offset = 0x4, fixed_abs, tag = 'smem constant byte address 0x4 - core index']
  #allocation1 [shape = 'u32[72,128]{1,0:T(1,128)}', space=vmem, size = 0x9000, scoped, tag = 'internal scratch']
  %s0 = inlined_call_operand.vmem [shape: f32[2,8,32], index: 0, kind: input, shape index: {}]
  %s1 = inlined_call_operand.vmem [shape: f32[3,4,32,16], index: 1, kind: input, shape index: {}]
  %s2 = inlined_call_operand.hbm [shape: f32[2,4,8,16], index: 2, kind: output, shape index: {0}]
  %s3 = inlined_call_operand.hbm [shape: f32[2,4,8,16], index: 3, kind: output, shape index: {1}]
  %s4 = inlined_call_operand.hbm [shape: f32[2,4,8,16], index: 4, kind: output, shape index: {2}]
  %5 = xla_tuple %s2, %s3, %s4
  %s6 = sld [smem:[#allocation0]]
  $region95: #{tpu_custom_call.1} parent=0
    _
  %s8 = ssub.s32 1, %s6
  %s9 = scalar_select 0, %s8, %s6
  $region1: #{tpu_custom_call.1} parent=0
    #allocation2 [shape = 'u8[98304]{0}', space=vmem, size = 0x18000, scoped, tag = 'input window, operand 1']
    #allocation3 [shape = 'u8[8192]{0}', space=vmem, size = 0x2000, scoped, tag = 'output window, operand 0']
    #allocation4 [shape = 's32[2]{0}', space=sflag, size = 0x8, scoped, tag = 'scoped memory for tpu_custom_call.1']
    #allocation5 [shape = 'u8[8192]{0}', space=vmem, size = 0x2000, scoped, tag = 'output window, operand 1']
    #allocation6 [shape = 's32[2]{0}', space=sflag, size = 0x8, scoped, tag = 'scoped memory for tpu_custom_call.1']
    #allocation7 [shape = 'u8[8192]{0}', space=vmem, size = 0x2000, scoped, tag = 'output window, operand 2']
    %10 = vsyncpa [#allocation4], 0
    %s11 = scalar_lea.sflag [#allocation4], 1
    %12 = vsyncpa %s11, 0
    %13 = vsyncpa [#allocation6], 0
    %s14 = scalar_lea.sflag [#allocation6], 1
    %15 = vsyncpa %s14, 0
    loop: start=0, step=1, limit=10
    $region2: #{tpu_custom_call.1} parent=1 // loop_pre_header
      _
    $region3: #{tpu_custom_call.1} parent=1 // loop_header
      %s17 = sphi 0, %s21
      %p18 = scmp.ge.s32.totalorder %s17, 10
      %s24 = sphi 0, %s43
      %s25 = sphi 0, %s39
      %s26 = sphi 0, %s35
      %s27 = sphi 0, %s24
      %s28 = sphi 0, %s25
      %s29 = sphi 0, %s26
      %s30 = sphi 0, %s27
      %s31 = sphi 0, %s28
      %s32 = sphi 0, %s29
      %s48 = sphi 0, %s50
      %s51 = sphi 0, %s48
      %s52 = sphi 0, %s51
      %s68 = sphi 0, %s52
      %s74 = sphi 0, %s76
      %s77 = sphi 0, %s74
      %s78 = sphi 0, %s77
      %s94 = sphi 0, %s78
      %s104 = sphi 0, %s106
      %s107 = sphi 0, %s104
      %s108 = sphi 0, %s107
      %s124 = sphi 0, %s108
      %s134 = sphi 0, %s136
      %s137 = sphi 0, %s134
      %s138 = sphi 0, %s137
      %s154 = sphi 0, %s138
      %s164 = sphi 0, %s166
      %s167 = sphi 0, %s164
      %s168 = sphi 0, %s167
      %s184 = sphi 0, %s168
    $region4: #{tpu_custom_call.1} parent=1 // loop_header_branch
      %20 = sbr.rel (%p18) target = $region8
    $region5: #{tpu_custom_call.1} parent=1 // loop_body
      %s22 = ssub.s32 %s17, 1
      %s23 = ssub.s32 %s17, 2
      %s33 = sadd.s32 1, %s26
      %p34 = scmp.ge.s32.totalorder %s33, 1
      %s35 = scalar_select %p34, 0, %s33
      %s36 = sadd.s32 1, %s25
      %s37 = scalar_select %p34, %s36, %s25
      %p38 = scmp.ge.s32.totalorder %s37, 4
      %s39 = scalar_select %p38, 0, %s37
      %s40 = sadd.s32 1, %s24
      %s41 = scalar_select %p38, %s40, %s24
      %p42 = scmp.ge.s32.totalorder %s41, 2
      %s43 = scalar_select %p42, 0, %s41
      %s44 = ssub.s32 %s24, %s43
      %s45 = ssub.s32 %s26, %s35
      %s46 = sor.u32 %s44, %s45
      %p47 = scmp.eq.s32.totalorder %s46, 0
      %s49 = sadd.s32 %s48, 1
      %s50 = scalar_select %p47, %s48, %s49
      %p53 = pneg %p47
      %p54 = scmp.eq.s32.totalorder %s17, 7
      %p55 = por %p53, %p54
      %p56 = scmp.ne.s32.totalorder %s48, %s51
      %p57 = scmp.eq.s32.totalorder %s17, 0
      %p58 = por %p56, %p57
      %p59 = scmp.ne.s32.totalorder %s48, %s51
      %p60 = scmp.eq.s32.totalorder %s22, 7
      %p61 = por %p59, %p60
      %p62 = scmp.ne.s32.totalorder %s51, %s52
      %p63 = scmp.eq.s32.totalorder %s22, 0
      %p64 = por %p62, %p63
      %p65 = scmp.ne.s32.totalorder %s51, %s52
      %p66 = scmp.eq.s32.totalorder %s23, 7
      %p67 = por %p65, %p66
      %p69 = scmp.ne.s32.totalorder %s52, %s68
      %p70 = scmp.eq.s32.totalorder %s23, 0
      %p71 = por %p69, %p70
      %s72 = ssub.s32 %s25, %s39
      %p73 = scmp.eq.s32.totalorder %s72, 0
      %s75 = sadd.s32 %s74, 1
      %s76 = scalar_select %p73, %s74, %s75
      %p79 = pneg %p73
      %p80 = scmp.eq.s32.totalorder %s17, 7
      %p81 = por %p79, %p80
      %p82 = scmp.ne.s32.totalorder %s74, %s77
      %p83 = scmp.eq.s32.totalorder %s17, 0
      %p84 = por %p82, %p83
      %p85 = scmp.ne.s32.totalorder %s74, %s77
      %p86 = scmp.eq.s32.totalorder %s22, 7
      %p87 = por %p85, %p86
      %p88 = scmp.ne.s32.totalorder %s77, %s78
      %p89 = scmp.eq.s32.totalorder %s22, 0
      %p90 = por %p88, %p89
      %p91 = scmp.ne.s32.totalorder %s77, %s78
      %p92 = scmp.eq.s32.totalorder %s23, 7
      %p93 = por %p91, %p92
      %p95 = scmp.ne.s32.totalorder %s78, %s94
      %p96 = scmp.eq.s32.totalorder %s23, 0
      %p97 = por %p95, %p96
      %s98 = ssub.s32 %s24, %s43
      %s99 = ssub.s32 %s25, %s39
      %s100 = sor.u32 %s98, %s99
      %s101 = ssub.s32 %s26, %s35
      %s102 = sor.u32 %s100, %s101
      %p103 = scmp.eq.s32.totalorder %s102, 0
      %s105 = sadd.s32 %s104, 1
      %s106 = scalar_select %p103, %s104, %s105
      %p109 = pneg %p103
      %p110 = scmp.eq.s32.totalorder %s17, 7
      %p111 = por %p109, %p110
      %p112 = scmp.ne.s32.totalorder %s104, %s107
      %p113 = scmp.eq.s32.totalorder %s17, 0
      %p114 = por %p112, %p113
      %p115 = scmp.ne.s32.totalorder %s104, %s107
      %p116 = scmp.eq.s32.totalorder %s22, 7
      %p117 = por %p115, %p116
      %p118 = scmp.ne.s32.totalorder %s107, %s108
      %p119 = scmp.eq.s32.totalorder %s22, 0
      %p120 = por %p118, %p119
      %p121 = scmp.ne.s32.totalorder %s107, %s108
      %p122 = scmp.eq.s32.totalorder %s23, 7
      %p123 = por %p121, %p122
      %p125 = scmp.ne.s32.totalorder %s108, %s124
      %p126 = scmp.eq.s32.totalorder %s23, 0
      %p127 = por %p125, %p126
      %s128 = ssub.s32 %s24, %s43
      %s129 = ssub.s32 %s25, %s39
      %s130 = sor.u32 %s128, %s129
      %s131 = ssub.s32 %s26, %s35
      %s132 = sor.u32 %s130, %s131
      %p133 = scmp.eq.s32.totalorder %s132, 0
      %s135 = sadd.s32 %s134, 1
      %s136 = scalar_select %p133, %s134, %s135
      %p139 = pneg %p133
      %p140 = scmp.eq.s32.totalorder %s17, 7
      %p141 = por %p139, %p140
      %p142 = scmp.ne.s32.totalorder %s134, %s137
      %p143 = scmp.eq.s32.totalorder %s17, 0
      %p144 = por %p142, %p143
      %p145 = scmp.ne.s32.totalorder %s134, %s137
      %p146 = scmp.eq.s32.totalorder %s22, 7
      %p147 = por %p145, %p146
      %p148 = scmp.ne.s32.totalorder %s137, %s138
      %p149 = scmp.eq.s32.totalorder %s22, 0
      %p150 = por %p148, %p149
      %p151 = scmp.ne.s32.totalorder %s137, %s138
      %p152 = scmp.eq.s32.totalorder %s23, 7
      %p153 = por %p151, %p152
      %p155 = scmp.ne.s32.totalorder %s138, %s154
      %p156 = scmp.eq.s32.totalorder %s23, 0
      %p157 = por %p155, %p156
      %s158 = ssub.s32 %s24, %s43
      %s159 = ssub.s32 %s25, %s39
      %s160 = sor.u32 %s158, %s159
      %s161 = ssub.s32 %s26, %s35
      %s162 = sor.u32 %s160, %s161
      %p163 = scmp.eq.s32.totalorder %s162, 0
      %s165 = sadd.s32 %s164, 1
      %s166 = scalar_select %p163, %s164, %s165
      %p169 = pneg %p163
      %p170 = scmp.eq.s32.totalorder %s17, 7
      %p171 = por %p169, %p170
      %p172 = scmp.ne.s32.totalorder %s164, %s167
      %p173 = scmp.eq.s32.totalorder %s17, 0
      %p174 = por %p172, %p173
      %p175 = scmp.ne.s32.totalorder %s164, %s167
      %p176 = scmp.eq.s32.totalorder %s22, 7
      %p177 = por %p175, %p176
      %p178 = scmp.ne.s32.totalorder %s167, %s168
      %p179 = scmp.eq.s32.totalorder %s22, 0
      %p180 = por %p178, %p179
      %p181 = scmp.ne.s32.totalorder %s167, %s168
      %p182 = scmp.eq.s32.totalorder %s23, 7
      %p183 = por %p181, %p182
      %p185 = scmp.ne.s32.totalorder %s168, %s184
      %p186 = scmp.eq.s32.totalorder %s23, 0
      %p187 = por %p185, %p186
      %p188 = scmp.le.s32.totalorder 1, %s17
      %p189 = scmp.lt.s32.totalorder %s17, 9
      %p190 = pnand %p188, %p189
      %p191 = pneg %p190
      // Predicated region
      $region9: #{tpu_custom_call.1} parent=5 // pred_check
        _
      $region10: #{tpu_custom_call.1} parent=5 // pred_check_branch
        %193 = sbr.rel (%p190) target = $region12
      $region11: #{tpu_custom_call.1} parent=5 // pred_region
        %s194 = ssub.s32 %s17, 1
      $region12: #{tpu_custom_call.1} parent=5 // pred_fallthru
        _
      %p195 = scmp.lt.s32.totalorder %s17, 8
      // Predicated region
      $region13: #{tpu_custom_call.1} parent=5 // pred_check
        %p196 = pneg %p195
      $region14: #{tpu_custom_call.1} parent=5 // pred_check_branch
        %198 = sbr.rel (%p196) target = $region16
      $region15: #{tpu_custom_call.1} parent=5 // pred_region
        // Predicated region
        $region17: #{tpu_custom_call.1} parent=15 // pred_check
          %p199 = pneg %p58
        $region18: #{tpu_custom_call.1} parent=15 // pred_check_branch
          %201 = sbr.rel (%p199) target = $region20
        $region19: #{tpu_custom_call.1} parent=15 // pred_region
          %p202 = scmp.lt.s32.totalorder %s24, 1
          %s203 = scalar_select %p202, %s24, 1
          %p204 = scmp.lt.s32.totalorder %s26, 0
          %s205 = scalar_select %p204, %s26, 0
          %s206 = sadd.s32 %s205, %s203
          %s207 = smul.addr %s206, 8
          %s208 = scalar_lea.vmem %s0, %s207
        $region20: #{tpu_custom_call.1} parent=15 // pred_fallthru
          _
        // Predicated region
        $region21: #{tpu_custom_call.1} parent=15 // pred_check
          %p209 = pneg %p84
        $region22: #{tpu_custom_call.1} parent=15 // pred_check_branch
          %211 = sbr.rel (%p209) target = $region24
        $region23: #{tpu_custom_call.1} parent=15 // pred_region
          %s212 = sand.u32 %s74, 1
          %s213 = sand.u32 %s74, 1
          %s214 = smul.addr %s213, 96
          %s215 = scalar_lea.vmem [#allocation2], %s214
          %s216 = smul.addr %s25, 4
          %s217 = smul.addr %s216, 8
          %s218 = scalar_lea.vmem %s1, %s217
          // Predicated region
          $region25: #{tpu_custom_call.1} parent=23 // pred_check
            _
          $region26: #{tpu_custom_call.1} parent=23 // pred_check_branch
            %220 = sbr.rel (0) target = $region28
          $region27: #{tpu_custom_call.1} parent=23 // pred_region
            // Predicated region
            $region29: #{tpu_custom_call.1} parent=27 // pred_check
              _
            $region30: #{tpu_custom_call.1} parent=27 // pred_check_branch
              %222 = sbr.rel (0) target = $region32
            $region31: #{tpu_custom_call.1} parent=27 // pred_region
              // Predicated region
              $region44: #{tpu_custom_call.1} parent=31 // pred_check
                _
              $region45: #{tpu_custom_call.1} parent=31 // pred_check_branch
                %260 = sbr.rel (0) target = $region47
              $region46: #{tpu_custom_call.1} parent=31 // pred_region
                loop: start=0, step=1, limit=1
                $region48: #{tpu_custom_call.1} parent=46 // loop_pre_header
                  _
                $region49: #{tpu_custom_call.1} parent=46 // loop_header
                  %s262 = sphi 0, %s266
                  %p263 = scmp.ge.s32.totalorder %s262, 1
                  %s267 = sphi %s218, %s218
                  %s268 = sphi %s215, %s215
                $region50: #{tpu_custom_call.1} parent=46 // loop_header_branch
                  %265 = sbr.rel (%p263) target = $region54
                $region51: #{tpu_custom_call.1} parent=46 // loop_body
                  %v269 = vld [vmem:[%s267] sm:$0xff]
                  %270 = vst [vmem:[%s268] sm:$0xff] %v269
                  %v271 = vld [vmem:[%s267 + $0x8] sm:$0xff]
                  %272 = vst [vmem:[%s268 + $0x8] sm:$0xff] %v271
                  %v273 = vld [vmem:[%s267 + $0x10] sm:$0xff]
                  %274 = vst [vmem:[%s268 + $0x10] sm:$0xff] %v273
                  %v275 = vld [vmem:[%s267 + $0x18] sm:$0xff]
                  %276 = vst [vmem:[%s268 + $0x18] sm:$0xff] %v275
                  %v277 = vld [vmem:[%s267 + $0x80] sm:$0xff]
                  %278 = vst [vmem:[%s268 + $0x20] sm:$0xff] %v277
                  %v279 = vld [vmem:[%s267 + $0x88] sm:$0xff]
                  %280 = vst [vmem:[%s268 + $0x28] sm:$0xff] %v279
                  %v281 = vld [vmem:[%s267 + $0x90] sm:$0xff]
                  %282 = vst [vmem:[%s268 + $0x30] sm:$0xff] %v281
                  %v283 = vld [vmem:[%s267 + $0x98] sm:$0xff]
                  %284 = vst [vmem:[%s268 + $0x38] sm:$0xff] %v283
                  %v285 = vld [vmem:[%s267 + $0x100] sm:$0xff]
                  %286 = vst [vmem:[%s268 + $0x40] sm:$0xff] %v285
                  %v287 = vld [vmem:[%s267 + $0x108] sm:$0xff]
                  %288 = vst [vmem:[%s268 + $0x48] sm:$0xff] %v287
                  %v289 = vld [vmem:[%s267 + $0x110] sm:$0xff]
                  %290 = vst [vmem:[%s268 + $0x50] sm:$0xff] %v289
                  %v291 = vld [vmem:[%s267 + $0x118] sm:$0xff]
                  %292 = vst [vmem:[%s268 + $0x58] sm:$0xff] %v291
                $region52: #{tpu_custom_call.1} parent=46 // loop_footer
                  %s266 = sadd.s32 1, %s262
                $region53: #{tpu_custom_call.1} parent=46 // loop_footer_branch
                  %261 = sbr.rel target = $region49
                $region54: #{tpu_custom_call.1} parent=46 // loop_exit
                  _
              $region47: #{tpu_custom_call.1} parent=31 // pred_fallthru
                _
              // Predicated region
              $region55: #{tpu_custom_call.1} parent=31 // pred_check
                _
              $region56: #{tpu_custom_call.1} parent=31 // pred_check_branch
                %294 = sbr.rel target = $region58
              $region57: #{tpu_custom_call.1} parent=31 // pred_region
                _
              $region58: #{tpu_custom_call.1} parent=31 // pred_fallthru
                _
            $region32: #{tpu_custom_call.1} parent=27 // pred_fallthru
              _
            // Predicated region
            $region33: #{tpu_custom_call.1} parent=27 // pred_check
              _
            $region34: #{tpu_custom_call.1} parent=27 // pred_check_branch
              %224 = sbr.rel target = $region36
            $region35: #{tpu_custom_call.1} parent=27 // pred_region
              %s226 = ssub.s32 256, 1
              loop: start=0, step=1, limit=1
              $region37: #{tpu_custom_call.1} parent=35 // loop_pre_header
                _
              $region38: #{tpu_custom_call.1} parent=35 // loop_header
                %s228 = sphi 0, %s232
                %p229 = scmp.ge.s32.totalorder %s228, 1
                %s233 = sphi %s218, %s218
                %s234 = sphi %s215, %s215
              $region39: #{tpu_custom_call.1} parent=35 // loop_header_branch
                %231 = sbr.rel (%p229) target = $region43
              $region40: #{tpu_custom_call.1} parent=35 // loop_body
                %v235 = vld [vmem:[%s233] sm:%s226]
                %236 = vst [vmem:[%s234] sm:%s226] %v235
                %v237 = vld [vmem:[%s233 + $0x8] sm:%s226]
                %238 = vst [vmem:[%s234 + $0x8] sm:%s226] %v237
                %v239 = vld [vmem:[%s233 + $0x10] sm:%s226]
                %240 = vst [vmem:[%s234 + $0x10] sm:%s226] %v239
                %v241 = vld [vmem:[%s233 + $0x18] sm:%s226]
                %242 = vst [vmem:[%s234 + $0x18] sm:%s226] %v241
                %v243 = vld [vmem:[%s233 + $0x80] sm:%s226]
                %244 = vst [vmem:[%s234 + $0x20] sm:%s226] %v243
                %v245 = vld [vmem:[%s233 + $0x88] sm:%s226]
                %246 = vst [vmem:[%s234 + $0x28] sm:%s226] %v245
                %v247 = vld [vmem:[%s233 + $0x90] sm:%s226]
                %248 = vst [vmem:[%s234 + $0x30] sm:%s226] %v247
                %v249 = vld [vmem:[%s233 + $0x98] sm:%s226]
                %250 = vst [vmem:[%s234 + $0x38] sm:%s226] %v249
                %v251 = vld [vmem:[%s233 + $0x100] sm:%s226]
                %252 = vst [vmem:[%s234 + $0x40] sm:%s226] %v251
                %v253 = vld [vmem:[%s233 + $0x108] sm:%s226]
                %254 = vst [vmem:[%s234 + $0x48] sm:%s226] %v253
                %v255 = vld [vmem:[%s233 + $0x110] sm:%s226]
                %256 = vst [vmem:[%s234 + $0x50] sm:%s226] %v255
                %v257 = vld [vmem:[%s233 + $0x118] sm:%s226]
                %258 = vst [vmem:[%s234 + $0x58] sm:%s226] %v257
              $region41: #{tpu_custom_call.1} parent=35 // loop_footer
                %s232 = sadd.s32 1, %s228
              $region42: #{tpu_custom_call.1} parent=35 // loop_footer_branch
                %227 = sbr.rel target = $region38
              $region43: #{tpu_custom_call.1} parent=35 // loop_exit
                _
            $region36: #{tpu_custom_call.1} parent=27 // pred_fallthru
              _
          $region28: #{tpu_custom_call.1} parent=23 // pred_fallthru
            _
          %295 = vnop
        $region24: #{tpu_custom_call.1} parent=15 // pred_fallthru
          _
      $region16: #{tpu_custom_call.1} parent=5 // pred_fallthru
        _
      %p296 = scmp.le.s32.totalorder 1, %s17
      %p297 = scmp.lt.s32.totalorder %s17, 9
      %p298 = pnand %p296, %p297
      %p299 = pneg %p298
      // Predicated region
      $region59: #{tpu_custom_call.1} parent=5 // pred_check
        _
      $region60: #{tpu_custom_call.1} parent=5 // pred_check_branch
        %301 = sbr.rel (%p298) target = $region62
      $region61: #{tpu_custom_call.1} parent=5 // pred_region
        %s302 = ssub.s32 %s17, 1
        %s303 = sand.u32 %s77, 1
        %s304 = sand.u32 %s77, 1
        %s305 = smul.addr %s304, 96
        %s306 = scalar_lea.vmem [#allocation2], %s305
        // Predicated region
        $region63: #{tpu_custom_call.1} parent=61 // pred_check
          %p307 = pneg %p90
        $region64: #{tpu_custom_call.1} parent=61 // pred_check_branch
          %309 = sbr.rel (%p307) target = $region66
        $region65: #{tpu_custom_call.1} parent=61 // pred_region
          _
        $region66: #{tpu_custom_call.1} parent=61 // pred_fallthru
          _
        %p310 = scmp.lt.s32.totalorder %s27, 1
        %s311 = scalar_select %p310, %s27, 1
        %p312 = scmp.lt.s32.totalorder %s29, 0
        %s313 = scalar_select %p312, %s29, 0
        %s314 = sadd.s32 %s313, %s311
        %s315 = smul.addr %s314, 8
        %s316 = scalar_lea.vmem %s0, %s315
        %p317 = pneg %p64
        %p318 = pneg %p61
        %s319 = sand.u32 %s77, 1
        %s320 = sand.u32 %s77, 1
        %s321 = smul.addr %s320, 96
        %s322 = scalar_lea.vmem [#allocation2], %s321
        %p323 = pneg %p90
        %p324 = pneg %p87
        %p325 = pneg %p120
        %p326 = pneg %p117
        %s327 = sand.u32 %s107, 1
        %s328 = scalar_lea.sflag [#allocation4], %s327
        %s329 = sand.u32 %s107, 1
        %s330 = smul.addr %s329, 8
        %s331 = scalar_lea.vmem [#allocation3], %s330
        %p332 = pneg %p150
        %p333 = pneg %p147
        %s334 = sand.u32 %s22, 1
        %s335 = scalar_lea.sflag [#allocation6], %s334
        %s336 = sand.u32 %s137, 1
        %s337 = smul.addr %s336, 8
        %s338 = scalar_lea.vmem [#allocation5], %s337
        %p339 = pneg %p180
        %p340 = pneg %p177
        %s341 = sand.u32 %s22, 1
        %s342 = scalar_lea.sflag [#allocation6], %s341
        %s343 = sand.u32 %s167, 1
        %s344 = smul.addr %s343, 8
        %s345 = scalar_lea.vmem [#allocation7], %s344
        %p346 = scmp.lt.s32.totalorder %s27, 1
        %s347 = scalar_select %p346, %s27, 1
        %p348 = scmp.lt.s32.totalorder %s29, 0
        %s349 = scalar_select %p348, %s29, 0
        %s350 = sadd.s32 %s349, %s347
        %s351 = smul.addr %s350, 8
        %s352 = scalar_lea.vmem %s0, %s351
        %v353 = vld [vmem:[%s352] sm:$0xff]
        %v354 = vld [vmem:[%s306] sm:$0xff]
        %v355 = vld [vmem:[%s306 + $0x8] sm:$0xff]
        %v356 = vld [vmem:[%s306 + $0x10] sm:$0xff]
        %v357 = vld [vmem:[%s306 + $0x18] sm:$0xff]
        %vm358 = vcmask 261120
        %v360 = vsel %vm358, %v353, 0
        %362 = vmatpush.msra.mxu0 0.0
        %363 = vmatpush.msra.mxu0 0.0
        %364 = vmatpush.msra.mxu0 0.0
        %365 = vmatpush.msra.mxu0 0.0
        %366 = vmatpush.msra.mxu0 0.0
        %367 = vmatpush.msra.mxu0 0.0
        %368 = vmatpush.msra.mxu0 0.0
        %369 = vmatpush.msra.mxu0 0.0
        %370 = vmatpush.msra.mxu0 0.0
        %371 = vmatpush.msra.mxu0 0.0
        %372 = vmatpush.msra.mxu0 0.0
        %373 = vmatpush.msra.mxu0 0.0
        %374 = vmatpush.msra.mxu0 %v357
        %375 = vmatpush.msra.mxu0 %v356
        %376 = vmatpush.msra.mxu0 %v355
        %377 = vmatpush.msra.mxu0 %v354
        %378 = vmatmul.f32.gmra.mxu0 %v360
        %v379 = vpop.f32.mrf.mxu0
        %v380 = vadd.f32 0.0, %v379
        %381 = vdwg.mxu0
        %vm382 = vcmask 130048
        %383 = vst.msk [vmem:[%s331] sm:$0xff] %vm382, %v380
        %s384 = scalar_lea.vmem %s306, 32 [#allocation2]
        %v385 = vld [vmem:[%s384] sm:$0xff]
        %v386 = vld [vmem:[%s384 + $0x8] sm:$0xff]
        %v387 = vld [vmem:[%s384 + $0x10] sm:$0xff]
        %v388 = vld [vmem:[%s384 + $0x18] sm:$0xff]
        %389 = vmatpush.msra.mxu0 0.0
        %390 = vmatpush.msra.mxu0 0.0
        %391 = vmatpush.msra.mxu0 0.0
        %392 = vmatpush.msra.mxu0 0.0
        %393 = vmatpush.msra.mxu0 0.0
        %394 = vmatpush.msra.mxu0 0.0
        %395 = vmatpush.msra.mxu0 0.0
        %396 = vmatpush.msra.mxu0 0.0
        %397 = vmatpush.msra.mxu0 0.0
        %398 = vmatpush.msra.mxu0 0.0
        %399 = vmatpush.msra.mxu0 0.0
        %400 = vmatpush.msra.mxu0 0.0
        %401 = vmatpush.msra.mxu0 %v388
        %402 = vmatpush.msra.mxu0 %v387
        %403 = vmatpush.msra.mxu0 %v386
        %404 = vmatpush.msra.mxu0 %v385
        %405 = vmatmul.f32.gmra.mxu0 %v360
        %v406 = vpop.f32.mrf.mxu0
        %v407 = vadd.f32 0.0, %v406
        %408 = vdwg.mxu0
        %409 = vst.msk [vmem:[%s338] sm:$0xff] %vm382, %v407
        %s410 = scalar_lea.vmem %s306, 64 [#allocation2]
        %v411 = vld [vmem:[%s410] sm:$0xff]
        %v412 = vld [vmem:[%s410 + $0x8] sm:$0xff]
        %v413 = vld [vmem:[%s410 + $0x10] sm:$0xff]
        %v414 = vld [vmem:[%s410 + $0x18] sm:$0xff]
        %415 = vmatpush.msra.mxu0 0.0
        %416 = vmatpush.msra.mxu0 0.0
        %417 = vmatpush.msra.mxu0 0.0
        %418 = vmatpush.msra.mxu0 0.0
        %419 = vmatpush.msra.mxu0 0.0
        %420 = vmatpush.msra.mxu0 0.0
        %421 = vmatpush.msra.mxu0 0.0
        %422 = vmatpush.msra.mxu0 0.0
        %423 = vmatpush.msra.mxu0 0.0
        %424 = vmatpush.msra.mxu0 0.0
        %425 = vmatpush.msra.mxu0 0.0
        %426 = vmatpush.msra.mxu0 0.0
        %427 = vmatpush.msra.mxu0 %v414
        %428 = vmatpush.msra.mxu0 %v413
        %429 = vmatpush.msra.mxu0 %v412
        %430 = vmatpush.msra.mxu0 %v411
        %431 = vmatmul.f32.gmra.mxu0 %v360
        %v432 = vpop.f32.mrf.mxu0
        %v433 = vadd.f32 0.0, %v432
        %434 = vdwg.mxu0
        %435 = vst.msk [vmem:[%s345] sm:$0xff] %vm382, %v433
        %s436 = sand.u32 %s107, 1
        %s437 = scalar_lea.sflag [#allocation4], %s436
        %s438 = sand.u32 %s107, 1
        %s439 = smul.addr %s438, 8
        %s440 = scalar_lea.vmem [#allocation3], %s439
        %s441 = sand.u32 %s22, 1
        %s442 = scalar_lea.sflag [#allocation6], %s441
        %s443 = sand.u32 %s137, 1
        %s444 = smul.addr %s443, 8
        %s445 = scalar_lea.vmem [#allocation5], %s444
        %s446 = sand.u32 %s22, 1
        %s447 = scalar_lea.sflag [#allocation6], %s446
        %s448 = sand.u32 %s167, 1
        %s449 = smul.addr %s448, 8
        %s450 = scalar_lea.vmem [#allocation7], %s449
        // Predicated region
        $region67: #{tpu_custom_call.1} parent=61 // pred_check
          %p451 = pneg %p117
        $region68: #{tpu_custom_call.1} parent=61 // pred_check_branch
          %453 = sbr.rel (%p451) target = $region70
        $region69: #{tpu_custom_call.1} parent=61 // pred_region
          %455 = vsyncadd %s437, 0
          %s456 = sadd.s32 %s29, %s28
          %s457 = smul.addr %s27, 4
          %s458 = sadd.s32 %s456, %s457
          %s459 = smul.addr %s458, 8
          %s460 = scalar_lea.hbm %s2, %s459
          %s462 = sshll.u32 %s440, 4
          %s463 = int_to_ptr.vmem [resolvable:$true] %s462
          %s464 = sshll.u32 %s460, 4
          %s465 = int_to_ptr.hbm [resolvable:$true] %s464
          %467 = dma.vmem_to_hbm [thread:$0]  %s463, 128, %s465, %s437
        $region70: #{tpu_custom_call.1} parent=61 // pred_fallthru
          _
        // Predicated region
        $region71: #{tpu_custom_call.1} parent=61 // pred_check
          %p468 = pneg %p147
        $region72: #{tpu_custom_call.1} parent=61 // pred_check_branch
          %470 = sbr.rel (%p468) target = $region74
        $region73: #{tpu_custom_call.1} parent=61 // pred_region
          %472 = vsyncadd %s442, 0
          %s473 = sadd.s32 %s29, %s28
          %s474 = smul.addr %s27, 4
          %s475 = sadd.s32 %s473, %s474
          %s476 = smul.addr %s475, 8
          %s477 = scalar_lea.hbm %s3, %s476
          %s479 = sshll.u32 %s445, 4
          %s480 = int_to_ptr.vmem [resolvable:$true] %s479
          %s481 = sshll.u32 %s477, 4
          %s482 = int_to_ptr.hbm [resolvable:$true] %s481
          %484 = dma.vmem_to_hbm [thread:$0]  %s480, 128, %s482, %s442
        $region74: #{tpu_custom_call.1} parent=61 // pred_fallthru
          _
        // Predicated region
        $region75: #{tpu_custom_call.1} parent=61 // pred_check
          %p485 = pneg %p177
        $region76: #{tpu_custom_call.1} parent=61 // pred_check_branch
          %487 = sbr.rel (%p485) target = $region78
        $region77: #{tpu_custom_call.1} parent=61 // pred_region
          %489 = vsyncadd %s447, 0
          %s490 = sadd.s32 %s29, %s28
          %s491 = smul.addr %s27, 4
          %s492 = sadd.s32 %s490, %s491
          %s493 = smul.addr %s492, 8
          %s494 = scalar_lea.hbm %s4, %s493
          %s496 = sshll.u32 %s450, 4
          %s497 = int_to_ptr.vmem [resolvable:$true] %s496
          %s498 = sshll.u32 %s494, 4
          %s499 = int_to_ptr.hbm [resolvable:$true] %s498
          %501 = dma.vmem_to_hbm [thread:$0]  %s497, 128, %s499, %s447
        $region78: #{tpu_custom_call.1} parent=61 // pred_fallthru
          _
      $region62: #{tpu_custom_call.1} parent=5 // pred_fallthru
        _
      %p502 = scmp.le.s32.totalorder 2, %s17
      // Predicated region
      $region79: #{tpu_custom_call.1} parent=5 // pred_check
        %p503 = pneg %p502
      $region80: #{tpu_custom_call.1} parent=5 // pred_check_branch
        %505 = sbr.rel (%p503) target = $region82
      $region81: #{tpu_custom_call.1} parent=5 // pred_region
        %s506 = ssub.s32 %s17, 2
        // Predicated region
        $region83: #{tpu_custom_call.1} parent=81 // pred_check
          %p507 = pneg %p123
        $region84: #{tpu_custom_call.1} parent=81 // pred_check_branch
          %509 = sbr.rel (%p507) target = $region86
        $region85: #{tpu_custom_call.1} parent=81 // pred_region
          %s510 = sand.u32 %s108, 1
          %s511 = scalar_lea.sflag [#allocation4], %s510
          %s512 = sand.u32 %s108, 1
          %s513 = smul.addr %s512, 8
          %s514 = scalar_lea.vmem [#allocation3], %s513
          %516 = dma.done %s511, 128
        $region86: #{tpu_custom_call.1} parent=81 // pred_fallthru
          _
        // Predicated region
        $region87: #{tpu_custom_call.1} parent=81 // pred_check
          %p517 = pneg %p153
        $region88: #{tpu_custom_call.1} parent=81 // pred_check_branch
          %519 = sbr.rel (%p517) target = $region90
        $region89: #{tpu_custom_call.1} parent=81 // pred_region
          %s520 = sand.u32 %s23, 1
          %s521 = scalar_lea.sflag [#allocation6], %s520
          %s522 = sand.u32 %s138, 1
          %s523 = smul.addr %s522, 8
          %s524 = scalar_lea.vmem [#allocation5], %s523
          %526 = dma.done %s521, 128
        $region90: #{tpu_custom_call.1} parent=81 // pred_fallthru
          _
        // Predicated region
        $region91: #{tpu_custom_call.1} parent=81 // pred_check
          %p527 = pneg %p183
        $region92: #{tpu_custom_call.1} parent=81 // pred_check_branch
          %529 = sbr.rel (%p527) target = $region94
        $region93: #{tpu_custom_call.1} parent=81 // pred_region
          %s530 = sand.u32 %s23, 1
          %s531 = scalar_lea.sflag [#allocation6], %s530
          %s532 = sand.u32 %s168, 1
          %s533 = smul.addr %s532, 8
          %s534 = scalar_lea.vmem [#allocation7], %s533
          %536 = dma.done %s531, 128
        $region94: #{tpu_custom_call.1} parent=81 // pred_fallthru
          _
      $region82: #{tpu_custom_call.1} parent=5 // pred_fallthru
        _
    $region6: #{tpu_custom_call.1} parent=1 // loop_footer
      %s21 = sadd.s32 1, %s17
    $region7: #{tpu_custom_call.1} parent=1 // loop_footer_branch
      %16 = sbr.rel target = $region3
    $region8: #{tpu_custom_call.1} parent=1 // loop_exit
      _
    %537 = vsyncpa [#allocation4], 1
    %s538 = scalar_lea.sflag [#allocation4], 1
    %539 = vsyncpa %s538, 1
    %540 = vsyncpa [#allocation6], 1
    %s541 = scalar_lea.sflag [#allocation6], 1
    %542 = vsyncpa %s541, 1

</llo_original>
